<compile_context>
chip_gen: v6e
topology: v6e:2x2x1
jax: 0.10.0
libtpu: 0.0.40
codegen_flags: <defaults>
</compile_context>

<pallas_src>
import functools
import math

import jax
import jax.numpy as jnp
from jax import lax
from jax.experimental import pallas as pl
from jax.experimental.pallas import tpu as pltpu

_EPS = 1e-12


# ----------------------------------------------------------------------------
# In-kernel helpers (traced inside the Pallas kernels)
# ----------------------------------------------------------------------------
def _l2_normalize(x):
    ssq = jnp.sum(x * x, axis=-1, keepdims=True)
    return x * lax.rsqrt(jnp.maximum(ssq, _EPS))


def _encode_project_normalize(x, w_enc, b_enc, w_proj, mxu_dtype):
    """Stand-in text encoder: mean-pool -> tanh(linear) -> projection -> L2 norm."""
    # NOTE: mean over axis=1 is a cross-sublane (XLU) reduce; fine at small L.  For
    #       CLIP-sized L, contract with a constant 1/L vector on the MXU instead.
    pooled = jnp.mean(x, axis=1)                                       # (N, H) f32
    h = jnp.tanh(jnp.dot(pooled.astype(mxu_dtype), w_enc.astype(mxu_dtype),
                         preferred_element_type=jnp.float32) + b_enc)  # f32
    f = jnp.dot(h.astype(mxu_dtype), w_proj.astype(mxu_dtype),
                preferred_element_type=jnp.float32)                    # (N, D) f32
    return _l2_normalize(f)


def _nt_logits(a, b, scale, mxu_dtype):
    """scale * a @ b.T, contracting the last dims directly (no transposed copy)."""
    return lax.dot_general(
        a.astype(mxu_dtype), b.astype(mxu_dtype),
        dimension_numbers=(((1,), (1,)), ((), ())),
        preferred_element_type=jnp.float32) * scale


def _symmetric_ce_loss(a, b, scale, mxu_dtype):
    """0.5*(CE(logits, arange) + CE(logits.T, arange)), logits = scale * a @ b.T.

    Per-row and per-column maxes (no single-global-max underflow); the trace is
    scale * sum(a*b) computed in f32 straight from the unit-norm features.
    """
    bsz = a.shape[0]
    tr = scale * jnp.sum(jnp.sum(a * b, axis=1, keepdims=True),
                         axis=0, keepdims=True)                        # (1, 1)
    logits = _nt_logits(a, b, scale, mxu_dtype)                        # (B, B) f32
    m_r = jnp.max(logits, axis=1, keepdims=True)                       # (B, 1)
    lse_r = m_r + jnp.log(jnp.sum(jnp.exp(logits - m_r), axis=1, keepdims=True))
    m_c = jnp.max(logits, axis=0, keepdims=True)                       # (1, B)
    lse_c = m_c + jnp.log(jnp.sum(jnp.exp(logits - m_c), axis=0, keepdims=True))
    s_r = jnp.sum(lse_r, axis=0, keepdims=True)                        # (1, 1)
    s_c = jnp.sum(lse_c, axis=1, keepdims=True)                        # (1, 1)
    return (0.5 * (s_r + s_c) - tr) * (1.0 / bsz)                      # (1, 1)


# ----------------------------------------------------------------------------
# Main path: batch-row grid, weight-resident BlockSpecs, online column-LSE
# ----------------------------------------------------------------------------
def _prompt_calib_main_kernel(scale_ref, sp_ref, img_row_ref, img_all_ref,
                              w_enc_ref, b_enc_ref, w_proj_ref, loss_ref,
                              cmax_ref, csum_ref, rlse_ref, tr_ref,
                              *, batch, mxu_dtype):
    i = pl.program_id(0)
    scale = scale_ref[0]                                               # SMEM scalar

    @pl.when(i == 0)
    def _init():
        cmax_ref[...] = jnp.full(cmax_ref.shape, -jnp.inf, cmax_ref.dtype)
        csum_ref[...] = jnp.zeros(csum_ref.shape, csum_ref.dtype)
        rlse_ref[...] = jnp.zeros(rlse_ref.shape, rlse_ref.dtype)
        tr_ref[...] = jnp.zeros(tr_ref.shape, tr_ref.dtype)

    # Encoder on this row tile (weights stay VMEM-resident across grid steps).
    t = _encode_project_normalize(sp_ref[...], w_enc_ref[...], b_enc_ref[...],
                                  w_proj_ref[...], mxu_dtype)          # (tm, D)
    im_row = _l2_normalize(img_row_ref[...])                           # (tm, D)
    im_all = _l2_normalize(img_all_ref[...])                           # (B, D)

    # Partial trace: scale * sum_r <t_r, im_r>, f32, no logits needed.
    tr_ref[...] += scale * jnp.sum(jnp.sum(t * im_row, axis=1, keepdims=True),
                                   axis=0, keepdims=True)

    logits = _nt_logits(t, im_all, scale, mxu_dtype)                   # (tm, B) f32

    # Row logsumexp: rows are complete within the tile (columns = all images).
    m_r = jnp.max(logits, axis=1, keepdims=True)
    lse_r = m_r + jnp.log(jnp.sum(jnp.exp(logits - m_r), axis=1, keepdims=True))
    rlse_ref[...] += jnp.sum(lse_r, axis=0, keepdims=True)

    # Online column logsumexp across row tiles.
    m_c_new = jnp.maximum(cmax_ref[...], jnp.max(logits, axis=0, keepdims=True))
    csum_ref[...] = (csum_ref[...] * jnp.exp(cmax_ref[...] - m_c_new)
                     + jnp.sum(jnp.exp(logits - m_c_new), axis=0, keepdims=True))
    cmax_ref[...] = m_c_new

    @pl.when(i == pl.num_programs(0) - 1)
    def _finalize():
        s_c = jnp.sum(cmax_ref[...] + jnp.log(csum_ref[...]), axis=1, keepdims=True)
        loss_ref[...] = (0.5 * (rlse_ref[...] + s_c) - tr_ref[...]) * (1.0 / batch)


# ----------------------------------------------------------------------------
# Aux path: one fused kernel, stacked encoder pass for prompt + caption embeds
# ----------------------------------------------------------------------------
def _prompt_calib_aux_kernel(scale_ref, sp_ref, cap_ref, img_ref,
                             w_enc_ref, b_enc_ref, w_proj_ref,
                             loss_ref, aux_ref, *, mxu_dtype):
    scale = scale_ref[0]
    bsz = sp_ref.shape[0]
    # Stack prompt + caption embeddings along batch: one encoder pass, i.e. one
    # (2B,H)@(H,H) and one (2B,H)@(H,D) matmul (single MXU weight-push sequence).
    x = jnp.concatenate([sp_ref[...], cap_ref[...]], axis=0)           # (2B, L, H)
    feats = _encode_project_normalize(x, w_enc_ref[...], b_enc_ref[...],
                                      w_proj_ref[...], mxu_dtype)      # (2B, D)
    t = feats[:bsz]        # text features   (keep B a multiple of 8 so the split
    lab = feats[bsz:]      # caption features is sublane-aligned)
    im = _l2_normalize(img_ref[...])
    loss_ref[...] = _symmetric_ce_loss(t, im, scale, mxu_dtype)
    aux_ref[...] = _symmetric_ce_loss(lab, t, scale, mxu_dtype)


_SMEM = pl.BlockSpec(memory_space=pltpu.MemorySpace.SMEM)
_VMEM = pl.BlockSpec(memory_space=pltpu.MemorySpace.VMEM)


# ----------------------------------------------------------------------------
# Module-level forward (mirrors PromptCalibration.forward)
# ----------------------------------------------------------------------------
def prompt_calibration_forward(params, soft_prompt, image_features,
                               caption_token_ids=None, *,
                               block_rows=None, mxu_dtype=jnp.bfloat16):
    b, l, h = soft_prompt.shape
    d = image_features.shape[-1]
    # exp(logit_scale) on the scalar path, delivered to the kernels through SMEM.
    scale = jnp.exp(params["logit_scale"]).astype(jnp.float32).reshape((1,))
    # Cast weights to the MXU dtype in the wrapper (halves their DMA when bf16);
    # the bias is added post-matmul in f32 and stays f32.
    w_enc = params["w_enc"].astype(mxu_dtype)
    w_proj = params["w_proj"].astype(mxu_dtype)
    b_enc = params["b_enc"].astype(jnp.float32)

    if caption_token_ids is None:
        tm = block_rows if block_rows is not None else min(b, 128)
        assert b % tm == 0, "batch must be divisible by block_rows"
        kernel = functools.partial(_prompt_calib_main_kernel,
                                   batch=b, mxu_dtype=mxu_dtype)
        loss = pl.pallas_call(
            kernel,
            grid=(b // tm,),
            in_specs=[
                _SMEM,                                                # exp(logit_scale)
                pl.BlockSpec((tm, l, h), lambda i: (i, 0, 0)),        # prompt row tile
                pl.BlockSpec((tm, d), lambda i: (i, 0)),              # image row tile
                pl.BlockSpec((b, d), lambda i: (0, 0)),               # all image rows
                pl.BlockSpec((h, h), lambda i: (0, 0)),               # resident weights
                pl.BlockSpec((1, h), lambda i: (0, 0)),
                pl.BlockSpec((h, d), lambda i: (0, 0)),
            ],
            out_specs=pl.BlockSpec((1, 1), lambda i: (0, 0)),
            out_shape=jax.ShapeDtypeStruct((1, 1), jnp.float32),
            scratch_shapes=[
                pltpu.VMEM((1, b), jnp.float32),   # running column max
                pltpu.VMEM((1, b), jnp.float32),   # running column sum
                pltpu.VMEM((1, 1), jnp.float32),   # sum of row logsumexps
                pltpu.VMEM((1, 1), jnp.float32),   # trace accumulator
            ],
            # The row-tile axis carries the online column-LSE / trace accumulation,
            # so it is a reduction axis ("arbitrary"), not "parallel".  To shard it
            # across v7x's two TensorCores, emit per-tile partials and reduce them
            # in a tiny follow-up step instead.
            compiler_params=pltpu.CompilerParams(
                dimension_semantics=("arbitrary",)),
            # TODO(synk): at CLIP scale also raise vmem_limit_bytes per chip
            #             (~48 MiB budget on v7x, ~100 MiB on v5e/v6e) and tile the
            #             logits column axis once (B, D) no longer fits one tile.
        )(scale, soft_prompt, image_features, image_features, w_enc, b_enc, w_proj)
        return loss[0, 0]

    # Aux path: caption tokens -> embeddings (XLA gather glue), then one fused
    # kernel computing both losses with a single stacked encoder pass.
    # TODO(synk): at production vocab/seq sizes drive this gather from inside the
    #             kernel (PrefetchScalarGridSpec + pl.Element row indexing) and tile
    #             the aux logits flash-style instead of full (B,B) residency.
    cap_embeds = jnp.take(params["token_embedding"], caption_token_ids, axis=0)
    kernel = functools.partial(_prompt_calib_aux_kernel, mxu_dtype=mxu_dtype)
    loss, aux_loss = pl.pallas_call(
        kernel,
        in_specs=[_SMEM] + [_VMEM] * 6,
        out_specs=(_VMEM, _VMEM),
        out_shape=(jax.ShapeDtypeStruct((1, 1), jnp.float32),
                   jax.ShapeDtypeStruct((1, 1), jnp.float32)),
    )(scale, soft_prompt, cap_embeds, image_features, w_enc, b_enc, w_proj)
    return loss[0, 0], aux_loss[0, 0]


# ----------------------------------------------------------------------------
# Pure-JAX reference (f32, highest matmul precision)
# ----------------------------------------------------------------------------
def _ref_encode(params, x):
    pooled = jnp.mean(x, axis=1)
    h = jnp.tanh(jnp.dot(pooled, params["w_enc"],
                         precision=lax.Precision.HIGHEST) + params["b_enc"])
    f = jnp.dot(h, params["w_proj"], precision=lax.Precision.HIGHEST)
    return f / jnp.linalg.norm(f, axis=-1, keepdims=True)


def _ref_clip_loss(t, im, logit_scale):
    im = im / jnp.linalg.norm(im, axis=-1, keepdims=True)
    logits = jnp.dot(t, im.T, precision=lax.Precision.HIGHEST) * jnp.exp(logit_scale)
    labels = jnp.arange(logits.shape[0])

    def ce(lg):
        lse = jax.scipy.special.logsumexp(lg, axis=-1)
        return jnp.mean(lse - lg[jnp.arange(lg.shape[0]), labels])

    return 0.5 * (ce(logits) + ce(logits.T))


if __name__ == "__main__":
    B, L, H, D, V = 16, 8, 128, 128, 64   # batch, seq, hidden, projection dim, vocab

    key = jax.random.PRNGKey(0)
    k_sp, k_img, k_enc, k_proj, k_emb, k_cap = jax.random.split(key, 6)

    params = {
        "w_enc": 0.05 * jax.random.normal(k_enc, (H, H), jnp.float32),
        "b_enc": jnp.zeros((1, H), jnp.float32),
        "w_proj": 0.05 * jax.random.normal(k_proj, (H, D), jnp.float32),
        "logit_scale": jnp.asarray(math.log(1.0 / 0.07), jnp.float32),
        "token_embedding": 0.02 * jax.random.normal(k_emb, (V, H), jnp.float32),
    }

    soft_prompt = jax.random.normal(k_sp, (B, L, H), jnp.float32)
    image_features = jax.random.normal(k_img, (B, D), jnp.float32)
    caption_token_ids = jax.random.randint(k_cap, (B, L), 0, V)

    # Pure-JAX reference.
    t_ref = _ref_encode(params, soft_prompt)
    ref_loss = _ref_clip_loss(t_ref, image_features, params["logit_scale"])
    cap_ref = _ref_encode(params,
                          jnp.take(params["token_embedding"], caption_token_ids, 0))
    ref_aux = _ref_clip_loss(cap_ref, t_ref, params["logit_scale"])

    # 1) f32 MXU operands, two row tiles -> exercises the online column-LSE.
    loss_f32 = prompt_calibration_forward(params, soft_prompt, image_features,
                                          block_rows=8, mxu_dtype=jnp.float32)
    loss_f32b, aux_f32 = prompt_calibration_forward(
        params, soft_prompt, image_features, caption_token_ids,
        mxu_dtype=jnp.float32)
    loss_f32, loss_f32b, aux_f32 = jax.block_until_ready(
        (loss_f32, loss_f32b, aux_f32))
    assert jnp.allclose(loss_f32, ref_loss, rtol=2e-2, atol=2e-2), (loss_f32, ref_loss)
    assert jnp.allclose(loss_f32b, ref_loss, rtol=2e-2, atol=2e-2), (loss_f32b, ref_loss)
    assert jnp.allclose(aux_f32, ref_aux, rtol=2e-2, atol=2e-2), (aux_f32, ref_aux)

    # 2) default bf16 MXU operands (production setting); looser tolerance.
    loss = prompt_calibration_forward(params, soft_prompt, image_features)
    loss2, aux_loss = prompt_calibration_forward(
        params, soft_prompt, image_features, caption_token_ids)
    loss, loss2, aux_loss = jax.block_until_ready((loss, loss2, aux_loss))
    assert jnp.allclose(loss, ref_loss, rtol=5e-2, atol=5e-2), (loss, ref_loss)
    assert jnp.allclose(loss2, ref_loss, rtol=5e-2, atol=5e-2), (loss2, ref_loss)
    assert jnp.allclose(aux_loss, ref_aux, rtol=5e-2, atol=5e-2), (aux_loss, ref_aux)

    print("KERNEL_OK")
</pallas_src>

<mosaic_0001>
module attributes {stable_mosaic.version = 11 : i64} {
  func.func @_prompt_calib_main_kernel(%arg0: i32, %arg1: memref<1xf32, #tpu.memory_space<smem>>, %arg2: memref<8x8x128xf32, #tpu.memory_space<vmem>>, %arg3: memref<8x128xf32, #tpu.memory_space<vmem>>, %arg4: memref<16x128xf32, #tpu.memory_space<vmem>>, %arg5: memref<128x128xf32, #tpu.memory_space<vmem>>, %arg6: memref<1x128xf32, #tpu.memory_space<vmem>>, %arg7: memref<128x128xf32, #tpu.memory_space<vmem>>, %arg8: memref<1x1xf32, #tpu.memory_space<vmem>>, %arg9: memref<1x16xf32, #tpu.memory_space<vmem>>, %arg10: memref<1x16xf32, #tpu.memory_space<vmem>>, %arg11: memref<1x1xf32, #tpu.memory_space<vmem>>, %arg12: memref<1x1xf32, #tpu.memory_space<vmem>>) attributes {dimension_semantics = [#tpu.dimension_semantics<arbitrary>], iteration_bounds = array<i64: 2>, scalar_prefetch = 0 : i64, scratch_operands = 4 : i64, tpu.core_type = #tpu.core_type<tc>, window_params = [{transform_indices = @transform_0, window_bounds = array<i64: 1>}, {transform_indices = @transform_1, window_bounds = array<i64: 8, 8, 128>}, {transform_indices = @transform_2, window_bounds = array<i64: 8, 128>}, {pipeline_mode = #tpu.pipeline_mode<synchronous>, transform_indices = @transform_3, window_bounds = array<i64: 16, 128>}, {pipeline_mode = #tpu.pipeline_mode<synchronous>, transform_indices = @transform_4, window_bounds = array<i64: 128, 128>}, {pipeline_mode = #tpu.pipeline_mode<synchronous>, transform_indices = @transform_5, window_bounds = array<i64: 1, 128>}, {pipeline_mode = #tpu.pipeline_mode<synchronous>, transform_indices = @transform_6, window_bounds = array<i64: 128, 128>}, {pipeline_mode = #tpu.pipeline_mode<synchronous>, transform_indices = @transform_7, window_bounds = array<i64: 1, 1>}]} {
    %c0 = arith.constant 0 : index
    %0 = memref.load %arg1[%c0] : memref<1xf32, #tpu.memory_space<smem>>
    %c0_i32 = arith.constant 0 : i32
    %1 = arith.cmpi eq, %arg0, %c0_i32 : i32
    %2 = arith.extui %1 : i1 to i32
    %c0_i32_0 = arith.constant 0 : i32
    %3 = arith.cmpi ne, %2, %c0_i32_0 : i32
    scf.if %3 {
      %cst_50 = arith.constant 0xFF800000 : f32
      %89 = vector.broadcast %cst_50 : f32 to vector<1x16xf32>
      %c0_51 = arith.constant 0 : index
      %c0_52 = arith.constant 0 : index
      %90 = vector.load %arg9[%c0_51, %c0_52] : memref<1x16xf32, #tpu.memory_space<vmem>>, vector<1x16xf32>
      tpu.vector_store %arg9[%c0_51, %c0_52], %89 {strides = array<i32>} : memref<1x16xf32, #tpu.memory_space<vmem>>, vector<1x16xf32>,
      %cst_53 = arith.constant 0.000000e+00 : f32
      %91 = vector.broadcast %cst_53 : f32 to vector<1x16xf32>
      %c0_54 = arith.constant 0 : index
      %c0_55 = arith.constant 0 : index
      %92 = vector.load %arg10[%c0_54, %c0_55] : memref<1x16xf32, #tpu.memory_space<vmem>>, vector<1x16xf32>
      tpu.vector_store %arg10[%c0_54, %c0_55], %91 {strides = array<i32>} : memref<1x16xf32, #tpu.memory_space<vmem>>, vector<1x16xf32>,
      %cst_56 = arith.constant 0.000000e+00 : f32
      %93 = vector.broadcast %cst_56 : f32 to vector<1x1xf32>
      %c0_57 = arith.constant 0 : index
      %c0_58 = arith.constant 0 : index
      %94 = vector.load %arg11[%c0_57, %c0_58] : memref<1x1xf32, #tpu.memory_space<vmem>>, vector<1x1xf32>
      tpu.vector_store %arg11[%c0_57, %c0_58], %93 {strides = array<i32>} : memref<1x1xf32, #tpu.memory_space<vmem>>, vector<1x1xf32>,
      %cst_59 = arith.constant 0.000000e+00 : f32
      %95 = vector.broadcast %cst_59 : f32 to vector<1x1xf32>
      %c0_60 = arith.constant 0 : index
      %c0_61 = arith.constant 0 : index
      %96 = vector.load %arg12[%c0_60, %c0_61] : memref<1x1xf32, #tpu.memory_space<vmem>>, vector<1x1xf32>
      tpu.vector_store %arg12[%c0_60, %c0_61], %95 {strides = array<i32>} : memref<1x1xf32, #tpu.memory_space<vmem>>, vector<1x1xf32>,
    } else {
    }
    %c0_1 = arith.constant 0 : index
    %c0_2 = arith.constant 0 : index
    %c0_3 = arith.constant 0 : index
    %4 = vector.load %arg2[%c0_1, %c0_2, %c0_3] : memref<8x8x128xf32, #tpu.memory_space<vmem>>, vector<8x8x128xf32>
    %c0_4 = arith.constant 0 : index
    %c0_5 = arith.constant 0 : index
    %5 = vector.load %arg5[%c0_4, %c0_5] : memref<128x128xf32, #tpu.memory_space<vmem>>, vector<128x128xf32>
    %c0_6 = arith.constant 0 : index
    %c0_7 = arith.constant 0 : index
    %6 = vector.load %arg6[%c0_6, %c0_7] : memref<1x128xf32, #tpu.memory_space<vmem>>, vector<1x128xf32>
    %c0_8 = arith.constant 0 : index
    %c0_9 = arith.constant 0 : index
    %7 = vector.load %arg7[%c0_8, %c0_9] : memref<128x128xf32, #tpu.memory_space<vmem>>, vector<128x128xf32>
    %cst = arith.constant dense<0.000000e+00> : vector<8x128xf32>
    %8 = vector.multi_reduction <add>, %4, %cst [1] : vector<8x8x128xf32> to vector<8x128xf32>
    %cst_10 = arith.constant 8.000000e+00 : f32
    %9 = vector.broadcast %cst_10 : f32 to vector<8x128xf32>
    %10 = arith.divf %8, %9 : vector<8x128xf32>
    %cst_11 = arith.constant dense<0.000000e+00> : vector<8x128xf32>
    %11 = tpu.matmul %10, %5, %cst_11 {dimension_numbers = #tpu.dot_dimension_numbers<[1], [0], [0], [1], [0, 0, 1, 1], [], []>} : vector<8x128xf32>, vector<128x128xf32>, vector<8x128xf32> -> vector<8x128xf32>
    %12 = vector.broadcast %6 : vector<1x128xf32> to vector<8x128xf32>
    %13 = arith.addf %11, %12 : vector<8x128xf32>
    %14 = math.tanh %13 : vector<8x128xf32>
    %cst_12 = arith.constant dense<0.000000e+00> : vector<8x128xf32>
    %15 = tpu.matmul %14, %7, %cst_12 {dimension_numbers = #tpu.dot_dimension_numbers<[1], [0], [0], [1], [0, 0, 1, 1], [], []>} : vector<8x128xf32>, vector<128x128xf32>, vector<8x128xf32> -> vector<8x128xf32>
    %16 = arith.mulf %15, %15 : vector<8x128xf32>
    %cst_13 = arith.constant dense<0.000000e+00> : vector<8xf32>
    %17 = vector.multi_reduction <add>, %16, %cst_13 [1] : vector<8x128xf32> to vector<8xf32>
    %18 = vector.shape_cast %17 : vector<8xf32> to vector<8x1xf32>
    %cst_14 = arith.constant 9.99999996E-13 : f32
    %19 = vector.broadcast %cst_14 : f32 to vector<8x1xf32>
    %20 = arith.maximumf %18, %19 : vector<8x1xf32>
    %21 = math.rsqrt %20 : vector<8x1xf32>
    %22 = vector.broadcast %21 : vector<8x1xf32> to vector<8x128xf32>
    %23 = arith.mulf %15, %22 : vector<8x128xf32>
    %c0_15 = arith.constant 0 : index
    %c0_16 = arith.constant 0 : index
    %24 = vector.load %arg3[%c0_15, %c0_16] : memref<8x128xf32, #tpu.memory_space<vmem>>, vector<8x128xf32>
    %25 = arith.mulf %24, %24 : vector<8x128xf32>
    %cst_17 = arith.constant dense<0.000000e+00> : vector<8xf32>
    %26 = vector.multi_reduction <add>, %25, %cst_17 [1] : vector<8x128xf32> to vector<8xf32>
    %27 = vector.shape_cast %26 : vector<8xf32> to vector<8x1xf32>
    %cst_18 = arith.constant 9.99999996E-13 : f32
    %28 = vector.broadcast %cst_18 : f32 to vector<8x1xf32>
    %29 = arith.maximumf %27, %28 : vector<8x1xf32>
    %30 = math.rsqrt %29 : vector<8x1xf32>
    %31 = vector.broadcast %30 : vector<8x1xf32> to vector<8x128xf32>
    %32 = arith.mulf %24, %31 : vector<8x128xf32>
    %c0_19 = arith.constant 0 : index
    %c0_20 = arith.constant 0 : index
    %33 = vector.load %arg4[%c0_19, %c0_20] : memref<16x128xf32, #tpu.memory_space<vmem>>, vector<16x128xf32>
    %34 = arith.mulf %33, %33 : vector<16x128xf32>
    %cst_21 = arith.constant dense<0.000000e+00> : vector<16xf32>
    %35 = vector.multi_reduction <add>, %34, %cst_21 [1] : vector<16x128xf32> to vector<16xf32>
    %36 = vector.shape_cast %35 : vector<16xf32> to vector<16x1xf32>
    %cst_22 = arith.constant 9.99999996E-13 : f32
    %37 = vector.broadcast %cst_22 : f32 to vector<16x1xf32>
    %38 = arith.maximumf %36, %37 : vector<16x1xf32>
    %39 = math.rsqrt %38 : vector<16x1xf32>
    %40 = vector.broadcast %39 : vector<16x1xf32> to vector<16x128xf32>
    %41 = arith.mulf %33, %40 : vector<16x128xf32>
    %c0_23 = arith.constant 0 : index
    %c0_24 = arith.constant 0 : index
    %42 = vector.load %arg12[%c0_23, %c0_24] : memref<1x1xf32, #tpu.memory_space<vmem>>, vector<1x1xf32>
    %43 = arith.mulf %23, %32 : vector<8x128xf32>
    %cst_25 = arith.constant dense<0.000000e+00> : vector<8xf32>
    %44 = vector.multi_reduction <add>, %43, %cst_25 [1] : vector<8x128xf32> to vector<8xf32>
    %45 = vector.shape_cast %44 : vector<8xf32> to vector<8x1xf32>
    %cst_26 = arith.constant dense<0.000000e+00> : vector<1xf32>
    %46 = vector.multi_reduction <add>, %45, %cst_26 [0] : vector<8x1xf32> to vector<1xf32>
    %47 = vector.shape_cast %46 : vector<1xf32> to vector<1x1xf32>
    %48 = vector.broadcast %0 : f32 to vector<1x1xf32>
    %49 = arith.mulf %48, %47 : vector<1x1xf32>
    %50 = arith.addf %42, %49 : vector<1x1xf32>
    %c0_27 = arith.constant 0 : index
    %c0_28 = arith.constant 0 : index
    %51 = vector.load %arg12[%c0_27, %c0_28] : memref<1x1xf32, #tpu.memory_space<vmem>>, vector<1x1xf32>
    tpu.vector_store %arg12[%c0_27, %c0_28], %50 {strides = array<i32>} : memref<1x1xf32, #tpu.memory_space<vmem>>, vector<1x1xf32>,
    %cst_29 = arith.constant dense<0.000000e+00> : vector<8x16xf32>
    %52 = tpu.matmul %23, %41, %cst_29 {dimension_numbers = #tpu.dot_dimension_numbers<[1], [1], [0], [0], [0, 0, 1, 0], [], []>} : vector<8x128xf32>, vector<16x128xf32>, vector<8x16xf32> -> vector<8x16xf32>
    %53 = vector.broadcast %0 : f32 to vector<8x16xf32>
    %54 = arith.mulf %52, %53 : vector<8x16xf32>
    %cst_30 = arith.constant dense<0xFF800000> : vector<8xf32>
    %55 = vector.multi_reduction <maximumf>, %54, %cst_30 [1] : vector<8x16xf32> to vector<8xf32>
    %56 = vector.shape_cast %55 : vector<8xf32> to vector<8x1xf32>
    %57 = vector.broadcast %56 : vector<8x1xf32> to vector<8x16xf32>
    %58 = arith.subf %54, %57 : vector<8x16xf32>
    %59 = math.exp %58 : vector<8x16xf32>
    %cst_31 = arith.constant dense<0.000000e+00> : vector<8xf32>
    %60 = vector.multi_reduction <add>, %59, %cst_31 [1] : vector<8x16xf32> to vector<8xf32>
    %61 = vector.shape_cast %60 : vector<8xf32> to vector<8x1xf32>
    %62 = math.log %61 : vector<8x1xf32>
    %63 = arith.addf %56, %62 : vector<8x1xf32>
    %c0_32 = arith.constant 0 : index
    %c0_33 = arith.constant 0 : index
    %64 = vector.load %arg11[%c0_32, %c0_33] : memref<1x1xf32, #tpu.memory_space<vmem>>, vector<1x1xf32>
    %cst_34 = arith.constant dense<0.000000e+00> : vector<1xf32>
    %65 = vector.multi_reduction <add>, %63, %cst_34 [0] : vector<8x1xf32> to vector<1xf32>
    %66 = vector.shape_cast %65 : vector<1xf32> to vector<1x1xf32>
    %67 = arith.addf %64, %66 : vector<1x1xf32>
    %c0_35 = arith.constant 0 : index
    %c0_36 = arith.constant 0 : index
    %68 = vector.load %arg11[%c0_35, %c0_36] : memref<1x1xf32, #tpu.memory_space<vmem>>, vector<1x1xf32>
    tpu.vector_store %arg11[%c0_35, %c0_36], %67 {strides = array<i32>} : memref<1x1xf32, #tpu.memory_space<vmem>>, vector<1x1xf32>,
    %c0_37 = arith.constant 0 : index
    %c0_38 = arith.constant 0 : index
    %69 = vector.load %arg9[%c0_37, %c0_38] : memref<1x16xf32, #tpu.memory_space<vmem>>, vector<1x16xf32>
    %cst_39 = arith.constant dense<0xFF800000> : vector<16xf32>
    %70 = vector.multi_reduction <maximumf>, %54, %cst_39 [0] : vector<8x16xf32> to vector<16xf32>
    %71 = vector.shape_cast %70 : vector<16xf32> to vector<1x16xf32>
    %72 = arith.maximumf %69, %71 : vector<1x16xf32>
    %c0_40 = arith.constant 0 : index
    %c0_41 = arith.constant 0 : index
    %73 = vector.load %arg10[%c0_40, %c0_41] : memref<1x16xf32, #tpu.memory_space<vmem>>, vector<1x16xf32>
    %c0_42 = arith.constant 0 : index
    %c0_43 = arith.constant 0 : index
    %74 = vector.load %arg9[%c0_42, %c0_43] : memref<1x16xf32, #tpu.memory_space<vmem>>, vector<1x16xf32>
    %75 = arith.subf %74, %72 : vector<1x16xf32>
    %76 = math.exp %75 : vector<1x16xf32>
    %77 = arith.mulf %73, %76 : vector<1x16xf32>
    %78 = vector.broadcast %72 : vector<1x16xf32> to vector<8x16xf32>
    %79 = arith.subf %54, %78 : vector<8x16xf32>
    %80 = math.exp %79 : vector<8x16xf32>
    %cst_44 = arith.constant dense<0.000000e+00> : vector<16xf32>
    %81 = vector.multi_reduction <add>, %80, %cst_44 [0] : vector<8x16xf32> to vector<16xf32>
    %82 = vector.shape_cast %81 : vector<16xf32> to vector<1x16xf32>
    %83 = arith.addf %77, %82 : vector<1x16xf32>
    %c0_45 = arith.constant 0 : index
    %c0_46 = arith.constant 0 : index
    %84 = vector.load %arg10[%c0_45, %c0_46] : memref<1x16xf32, #tpu.memory_space<vmem>>, vector<1x16xf32>
    tpu.vector_store %arg10[%c0_45, %c0_46], %83 {strides = array<i32>} : memref<1x16xf32, #tpu.memory_space<vmem>>, vector<1x16xf32>,
    %c0_47 = arith.constant 0 : index
    %c0_48 = arith.constant 0 : index
    %85 = vector.load %arg9[%c0_47, %c0_48] : memref<1x16xf32, #tpu.memory_space<vmem>>, vector<1x16xf32>
    tpu.vector_store %arg9[%c0_47, %c0_48], %72 {strides = array<i32>} : memref<1x16xf32, #tpu.memory_space<vmem>>, vector<1x16xf32>,
    %c1_i32 = arith.constant 1 : i32
    %86 = arith.cmpi eq, %arg0, %c1_i32 : i32
    %87 = arith.extui %86 : i1 to i32
    %c0_i32_49 = arith.constant 0 : i32
    %88 = arith.cmpi ne, %87, %c0_i32_49 : i32
    scf.if %88 {
      %c0_50 = arith.constant 0 : index
      %c0_51 = arith.constant 0 : index
      %89 = vector.load %arg9[%c0_50, %c0_51] : memref<1x16xf32, #tpu.memory_space<vmem>>, vector<1x16xf32>
      %c0_52 = arith.constant 0 : index
      %c0_53 = arith.constant 0 : index
      %90 = vector.load %arg10[%c0_52, %c0_53] : memref<1x16xf32, #tpu.memory_space<vmem>>, vector<1x16xf32>
      %91 = math.log %90 : vector<1x16xf32>
      %92 = arith.addf %89, %91 : vector<1x16xf32>
      %cst_54 = arith.constant dense<0.000000e+00> : vector<1xf32>
      %93 = vector.multi_reduction <add>, %92, %cst_54 [1] : vector<1x16xf32> to vector<1xf32>
      %94 = vector.shape_cast %93 : vector<1xf32> to vector<1x1xf32>
      %c0_55 = arith.constant 0 : index
      %c0_56 = arith.constant 0 : index
      %95 = vector.load %arg11[%c0_55, %c0_56] : memref<1x1xf32, #tpu.memory_space<vmem>>, vector<1x1xf32>
      %96 = arith.addf %95, %94 : vector<1x1xf32>
      %cst_57 = arith.constant 5.000000e-01 : f32
      %97 = vector.broadcast %cst_57 : f32 to vector<1x1xf32>
      %98 = arith.mulf %97, %96 : vector<1x1xf32>
      %c0_58 = arith.constant 0 : index
      %c0_59 = arith.constant 0 : index
      %99 = vector.load %arg12[%c0_58, %c0_59] : memref<1x1xf32, #tpu.memory_space<vmem>>, vector<1x1xf32>
      %100 = arith.subf %98, %99 : vector<1x1xf32>
      %cst_60 = arith.constant 6.250000e-02 : f32
      %101 = vector.broadcast %cst_60 : f32 to vector<1x1xf32>
      %102 = arith.mulf %100, %101 : vector<1x1xf32>
      %c0_61 = arith.constant 0 : index
      %c0_62 = arith.constant 0 : index
      %103 = vector.load %arg8[%c0_61, %c0_62] : memref<1x1xf32, #tpu.memory_space<vmem>>, vector<1x1xf32>
      tpu.vector_store %arg8[%c0_61, %c0_62], %102 {strides = array<i32>} : memref<1x1xf32, #tpu.memory_space<vmem>>, vector<1x1xf32>,
    } else {
    }
    return
  }
  func.func @transform_0(%arg0: i32) -> i32 {
    %c0_i32 = arith.constant 0 : i32
    %c0_i32_0 = arith.constant 0 : i32
    return %c0_i32 : i32
  }
  func.func @transform_1(%arg0: i32) -> (i32, i32, i32) {
    %c0_i32 = arith.constant 0 : i32
    %c0_i32_0 = arith.constant 0 : i32
    %c0_i32_1 = arith.constant 0 : i32
    return %arg0, %c0_i32, %c0_i32_0 : i32, i32, i32
  }
  func.func @transform_2(%arg0: i32) -> (i32, i32) {
    %c0_i32 = arith.constant 0 : i32
    %c0_i32_0 = arith.constant 0 : i32
    return %arg0, %c0_i32 : i32, i32
  }
  func.func @transform_3(%arg0: i32) -> (i32, i32) {
    %c0_i32 = arith.constant 0 : i32
    %c0_i32_0 = arith.constant 0 : i32
    %c0_i32_1 = arith.constant 0 : i32
    return %c0_i32, %c0_i32_0 : i32, i32
  }
  func.func @transform_4(%arg0: i32) -> (i32, i32) {
    %c0_i32 = arith.constant 0 : i32
    %c0_i32_0 = arith.constant 0 : i32
    %c0_i32_1 = arith.constant 0 : i32
    return %c0_i32, %c0_i32_0 : i32, i32
  }
  func.func @transform_5(%arg0: i32) -> (i32, i32) {
    %c0_i32 = arith.constant 0 : i32
    %c0_i32_0 = arith.constant 0 : i32
    %c0_i32_1 = arith.constant 0 : i32
    return %c0_i32, %c0_i32_0 : i32, i32
  }
  func.func @transform_6(%arg0: i32) -> (i32, i32) {
    %c0_i32 = arith.constant 0 : i32
    %c0_i32_0 = arith.constant 0 : i32
    %c0_i32_1 = arith.constant 0 : i32
    return %c0_i32, %c0_i32_0 : i32, i32
  }
  func.func @transform_7(%arg0: i32) -> (i32, i32) {
    %c0_i32 = arith.constant 0 : i32
    %c0_i32_0 = arith.constant 0 : i32
    %c0_i32_1 = arith.constant 0 : i32
    return %c0_i32, %c0_i32_0 : i32, i32
  }
}

</mosaic_0001>

<llo_original>
// kernel: tpu_custom_call.1
$region0: #{tpu_custom_call.1}
  #allocation0 [shape = 'u32[]', space=smem, size = 0x4, offset = 0x4, fixed_abs, tag = 'smem constant byte address 0x4 - core index']
  #allocation1 [shape = 'u32[144,128]{1,0:T(1,128)}', space=vmem, size = 0x12000, scoped, tag = 'internal scratch']
  #allocation2 [shape = 'f32[1,16]{1,0:T(1,128)}', space=vmem, size = 0x200, scoped, tag = 'scratch operand']
  #allocation3 [shape = 'f32[1,16]{1,0:T(1,128)}', space=vmem, size = 0x200, scoped, tag = 'scratch operand']
  #allocation4 [shape = 'f32[1,1]{1,0:T(1,128)}', space=vmem, size = 0x200, scoped, tag = 'scratch operand']
  #allocation5 [shape = 'f32[1,1]{1,0:T(1,128)}', space=vmem, size = 0x200, scoped, tag = 'scratch operand']
  #allocation6 [shape = 'f32[1]{0:T(128)S(6)}', space=smem, size = 0x200, scoped, tag = 'scoped memory for tpu_custom_call.1']
  %s0 = inlined_call_operand.<no memory space> [shape: f32[1], index: 0, kind: input, shape index: {}]
  %s1 = inlined_call_operand.hbm [shape: f32[16,8,128], index: 1, kind: input, shape index: {}]
  %s2 = inlined_call_operand.hbm [shape: f32[16,128], index: 2, kind: input, shape index: {}]
  %s3 = inlined_call_operand.hbm [shape: f32[16,128], index: 3, kind: input, shape index: {}]
  %s4 = inlined_call_operand.hbm [shape: f32[128,128], index: 4, kind: input, shape index: {}]
  %s5 = inlined_call_operand.vmem [shape: f32[1,128], index: 5, kind: input, shape index: {}]
  %s6 = inlined_call_operand.hbm [shape: f32[128,128], index: 6, kind: input, shape index: {}]
  %s7 = inlined_call_operand.hbm [shape: f32[1,1], index: 7, kind: output, shape index: {}]
  %s8 = sld [smem:[#allocation0]]
  $region89: #{tpu_custom_call.1} parent=0
    _
  %s10 = ssub.s32 1, %s8
  %s11 = scalar_select 0, %s10, %s8
  %12 = sst [smem:[#allocation6]] %s0
  $region1: #{tpu_custom_call.1} parent=0
    #allocation7 [shape = 'u8[65536]{0}', space=vmem, size = 0x10000, scoped, tag = 'input window, operand 1']
    #allocation8 [shape = 's32[2]{0}', space=sflag, size = 0x8, scoped, tag = 'scoped memory for tpu_custom_call.1']
    #allocation9 [shape = 's32[2]{0}', space=sflag, size = 0x8, scoped, tag = 'scoped memory for tpu_custom_call.1']
    #allocation10 [shape = 'u8[8192]{0}', space=vmem, size = 0x2000, scoped, tag = 'input window, operand 2']
    #allocation11 [shape = 's32[2]{0}', space=sflag, size = 0x8, scoped, tag = 'scoped memory for tpu_custom_call.1']
    #allocation12 [shape = 'u8[8192]{0}', space=vmem, size = 0x2000, scoped, tag = 'input window, operand 3, single buffered']
    #allocation13 [shape = 'u8[65536]{0}', space=vmem, size = 0x10000, scoped, tag = 'input window, operand 4, single buffered']
    #allocation14 [shape = 's32[1]{0}', space=sflag, size = 0x4, scoped, tag = 'scoped memory for tpu_custom_call.1']
    #allocation15 [shape = 'u8[65536]{0}', space=vmem, size = 0x10000, scoped, tag = 'input window, operand 6, single buffered']
    #allocation16 [shape = 'u8[512]{0}', space=vmem, size = 0x400, scoped, tag = 'output window, operand 0, single buffered']
    %13 = vsyncpa [#allocation8], 0
    %s14 = scalar_lea.sflag [#allocation8], 1
    %15 = vsyncpa %s14, 0
    %16 = vsyncpa [#allocation11], 0
    %s17 = scalar_lea.sflag [#allocation11], 1
    %18 = vsyncpa %s17, 0
    %19 = vsyncpa [#allocation14], 0
    %20 = vsyncpa [#allocation9], 0
    loop: start=0, step=1, limit=4
    $region2: #{tpu_custom_call.1} parent=1 // loop_pre_header
      _
    $region3: #{tpu_custom_call.1} parent=1 // loop_header
      %s22 = sphi 0, %s26
      %p23 = scmp.ge.s32.totalorder %s22, 4
      %s30 = sphi 0, %s30
      %s32 = sphi 0, %s30
      %s33 = sphi 0, %s32
      %s47 = sphi 0, %s33
      %s53 = sphi 0, %s55
      %s56 = sphi 0, %s53
      %s57 = sphi 0, %s56
      %s73 = sphi 0, %s57
      %s79 = sphi 0, %s81
      %s82 = sphi 0, %s79
      %s83 = sphi 0, %s82
      %s99 = sphi 0, %s83
      %s103 = sphi 0, %s103
      %s105 = sphi 0, %s103
      %s106 = sphi 0, %s105
      %s120 = sphi 0, %s106
      %s124 = sphi 0, %s124
      %s126 = sphi 0, %s124
      %s127 = sphi 0, %s126
      %s141 = sphi 0, %s127
      %s145 = sphi 0, %s145
      %s147 = sphi 0, %s145
      %s148 = sphi 0, %s147
      %s162 = sphi 0, %s148
      %s166 = sphi 0, %s166
      %s168 = sphi 0, %s166
      %s169 = sphi 0, %s168
      %s183 = sphi 0, %s169
      %s187 = sphi 0, %s187
      %s189 = sphi 0, %s187
      %s190 = sphi 0, %s189
      %s204 = sphi 0, %s190
    $region4: #{tpu_custom_call.1} parent=1 // loop_header_branch
      %25 = sbr.rel (%p23) target = $region8
    $region5: #{tpu_custom_call.1} parent=1 // loop_body
      %s27 = ssub.s32 %s22, 1
      %s28 = ssub.s32 %s22, 2
      %s29 = sadd.s32 %s22, 1
      %s31 = sadd.s32 %s30, 1
      %p34 = scmp.eq.s32.totalorder %s22, 1
      %p35 = scmp.ne.s32.totalorder %s30, %s32
      %p36 = scmp.eq.s32.totalorder %s22, 0
      %p37 = por %p35, %p36
      %p38 = scmp.ne.s32.totalorder %s30, %s32
      %p39 = scmp.eq.s32.totalorder %s27, 1
      %p40 = por %p38, %p39
      %p41 = scmp.ne.s32.totalorder %s32, %s33
      %p42 = scmp.eq.s32.totalorder %s27, 0
      %p43 = por %p41, %p42
      %p44 = scmp.ne.s32.totalorder %s32, %s33
      %p45 = scmp.eq.s32.totalorder %s28, 1
      %p46 = por %p44, %p45
      %p48 = scmp.ne.s32.totalorder %s33, %s47
      %p49 = scmp.eq.s32.totalorder %s28, 0
      %p50 = por %p48, %p49
      %s51 = ssub.s32 %s22, %s29
      %p52 = scmp.eq.s32.totalorder %s51, 0
      %s54 = sadd.s32 %s53, 1
      %s55 = scalar_select %p52, %s53, %s54
      %p58 = pneg %p52
      %p59 = scmp.eq.s32.totalorder %s22, 1
      %p60 = por %p58, %p59
      %p61 = scmp.ne.s32.totalorder %s53, %s56
      %p62 = scmp.eq.s32.totalorder %s22, 0
      %p63 = por %p61, %p62
      %p64 = scmp.ne.s32.totalorder %s53, %s56
      %p65 = scmp.eq.s32.totalorder %s27, 1
      %p66 = por %p64, %p65
      %p67 = scmp.ne.s32.totalorder %s56, %s57
      %p68 = scmp.eq.s32.totalorder %s27, 0
      %p69 = por %p67, %p68
      %p70 = scmp.ne.s32.totalorder %s56, %s57
      %p71 = scmp.eq.s32.totalorder %s28, 1
      %p72 = por %p70, %p71
      %p74 = scmp.ne.s32.totalorder %s57, %s73
      %p75 = scmp.eq.s32.totalorder %s28, 0
      %p76 = por %p74, %p75
      %s77 = ssub.s32 %s22, %s29
      %p78 = scmp.eq.s32.totalorder %s77, 0
      %s80 = sadd.s32 %s79, 1
      %s81 = scalar_select %p78, %s79, %s80
      %p84 = pneg %p78
      %p85 = scmp.eq.s32.totalorder %s22, 1
      %p86 = por %p84, %p85
      %p87 = scmp.ne.s32.totalorder %s79, %s82
      %p88 = scmp.eq.s32.totalorder %s22, 0
      %p89 = por %p87, %p88
      %p90 = scmp.ne.s32.totalorder %s79, %s82
      %p91 = scmp.eq.s32.totalorder %s27, 1
      %p92 = por %p90, %p91
      %p93 = scmp.ne.s32.totalorder %s82, %s83
      %p94 = scmp.eq.s32.totalorder %s27, 0
      %p95 = por %p93, %p94
      %p96 = scmp.ne.s32.totalorder %s82, %s83
      %p97 = scmp.eq.s32.totalorder %s28, 1
      %p98 = por %p96, %p97
      %p100 = scmp.ne.s32.totalorder %s83, %s99
      %p101 = scmp.eq.s32.totalorder %s28, 0
      %p102 = por %p100, %p101
      %s104 = sadd.s32 %s103, 1
      %p107 = scmp.eq.s32.totalorder %s22, 1
      %p108 = scmp.ne.s32.totalorder %s103, %s105
      %p109 = scmp.eq.s32.totalorder %s22, 0
      %p110 = por %p108, %p109
      %p111 = scmp.ne.s32.totalorder %s103, %s105
      %p112 = scmp.eq.s32.totalorder %s27, 1
      %p113 = por %p111, %p112
      %p114 = scmp.ne.s32.totalorder %s105, %s106
      %p115 = scmp.eq.s32.totalorder %s27, 0
      %p116 = por %p114, %p115
      %p117 = scmp.ne.s32.totalorder %s105, %s106
      %p118 = scmp.eq.s32.totalorder %s28, 1
      %p119 = por %p117, %p118
      %p121 = scmp.ne.s32.totalorder %s106, %s120
      %p122 = scmp.eq.s32.totalorder %s28, 0
      %p123 = por %p121, %p122
      %s125 = sadd.s32 %s124, 1
      %p128 = scmp.eq.s32.totalorder %s22, 1
      %p129 = scmp.ne.s32.totalorder %s124, %s126
      %p130 = scmp.eq.s32.totalorder %s22, 0
      %p131 = por %p129, %p130
      %p132 = scmp.ne.s32.totalorder %s124, %s126
      %p133 = scmp.eq.s32.totalorder %s27, 1
      %p134 = por %p132, %p133
      %p135 = scmp.ne.s32.totalorder %s126, %s127
      %p136 = scmp.eq.s32.totalorder %s27, 0
      %p137 = por %p135, %p136
      %p138 = scmp.ne.s32.totalorder %s126, %s127
      %p139 = scmp.eq.s32.totalorder %s28, 1
      %p140 = por %p138, %p139
      %p142 = scmp.ne.s32.totalorder %s127, %s141
      %p143 = scmp.eq.s32.totalorder %s28, 0
      %p144 = por %p142, %p143
      %s146 = sadd.s32 %s145, 1
      %p149 = scmp.eq.s32.totalorder %s22, 1
      %p150 = scmp.ne.s32.totalorder %s145, %s147
      %p151 = scmp.eq.s32.totalorder %s22, 0
      %p152 = por %p150, %p151
      %p153 = scmp.ne.s32.totalorder %s145, %s147
      %p154 = scmp.eq.s32.totalorder %s27, 1
      %p155 = por %p153, %p154
      %p156 = scmp.ne.s32.totalorder %s147, %s148
      %p157 = scmp.eq.s32.totalorder %s27, 0
      %p158 = por %p156, %p157
      %p159 = scmp.ne.s32.totalorder %s147, %s148
      %p160 = scmp.eq.s32.totalorder %s28, 1
      %p161 = por %p159, %p160
      %p163 = scmp.ne.s32.totalorder %s148, %s162
      %p164 = scmp.eq.s32.totalorder %s28, 0
      %p165 = por %p163, %p164
      %s167 = sadd.s32 %s166, 1
      %p170 = scmp.eq.s32.totalorder %s22, 1
      %p171 = scmp.ne.s32.totalorder %s166, %s168
      %p172 = scmp.eq.s32.totalorder %s22, 0
      %p173 = por %p171, %p172
      %p174 = scmp.ne.s32.totalorder %s166, %s168
      %p175 = scmp.eq.s32.totalorder %s27, 1
      %p176 = por %p174, %p175
      %p177 = scmp.ne.s32.totalorder %s168, %s169
      %p178 = scmp.eq.s32.totalorder %s27, 0
      %p179 = por %p177, %p178
      %p180 = scmp.ne.s32.totalorder %s168, %s169
      %p181 = scmp.eq.s32.totalorder %s28, 1
      %p182 = por %p180, %p181
      %p184 = scmp.ne.s32.totalorder %s169, %s183
      %p185 = scmp.eq.s32.totalorder %s28, 0
      %p186 = por %p184, %p185
      %s188 = sadd.s32 %s187, 1
      %p191 = scmp.eq.s32.totalorder %s22, 1
      %p192 = scmp.ne.s32.totalorder %s187, %s189
      %p193 = scmp.eq.s32.totalorder %s22, 0
      %p194 = por %p192, %p193
      %p195 = scmp.ne.s32.totalorder %s187, %s189
      %p196 = scmp.eq.s32.totalorder %s27, 1
      %p197 = por %p195, %p196
      %p198 = scmp.ne.s32.totalorder %s189, %s190
      %p199 = scmp.eq.s32.totalorder %s27, 0
      %p200 = por %p198, %p199
      %p201 = scmp.ne.s32.totalorder %s189, %s190
      %p202 = scmp.eq.s32.totalorder %s28, 1
      %p203 = por %p201, %p202
      %p205 = scmp.ne.s32.totalorder %s190, %s204
      %p206 = scmp.eq.s32.totalorder %s28, 0
      %p207 = por %p205, %p206
      %p208 = scmp.le.s32.totalorder 1, %s22
      %p209 = scmp.lt.s32.totalorder %s22, 3
      %p210 = pnand %p208, %p209
      %p211 = pneg %p210
      // Predicated region
      $region9: #{tpu_custom_call.1} parent=5 // pred_check
        _
      $region10: #{tpu_custom_call.1} parent=5 // pred_check_branch
        %213 = sbr.rel (%p210) target = $region12
      $region11: #{tpu_custom_call.1} parent=5 // pred_region
        %s214 = ssub.s32 %s22, 1
        // Predicated region
        $region13: #{tpu_custom_call.1} parent=11 // pred_check
          %p215 = pneg %p43
        $region14: #{tpu_custom_call.1} parent=11 // pred_check_branch
          %217 = sbr.rel (%p215) target = $region16
        $region15: #{tpu_custom_call.1} parent=11 // pred_region
          _
        $region16: #{tpu_custom_call.1} parent=11 // pred_fallthru
          _
        // Predicated region
        $region17: #{tpu_custom_call.1} parent=11 // pred_check
          %p218 = pneg %p116
        $region18: #{tpu_custom_call.1} parent=11 // pred_check_branch
          %220 = sbr.rel (%p218) target = $region20
        $region19: #{tpu_custom_call.1} parent=11 // pred_region
          %s222 = ssub.s32 256, 256
          %223 = vsyncadd [#allocation11], %s222
          %s224 = sshll.u32 [#allocation12], 4
          %s225 = int_to_ptr.vmem [resolvable:$true] %s224
          %230 = dma.hbm_to_vmem [thread:$0]  %s3, 256, %s225, [#allocation11], 128, 128, 8
        $region20: #{tpu_custom_call.1} parent=11 // pred_fallthru
          _
        // Predicated region
        $region21: #{tpu_custom_call.1} parent=11 // pred_check
          %p231 = pneg %p137
        $region22: #{tpu_custom_call.1} parent=11 // pred_check_branch
          %233 = sbr.rel (%p231) target = $region24
        $region23: #{tpu_custom_call.1} parent=11 // pred_region
          %s235 = ssub.s32 2048, 2048
          %236 = vsyncadd [#allocation14], %s235
          %s237 = sshll.u32 [#allocation13], 4
          %s238 = int_to_ptr.vmem [resolvable:$true] %s237
          %243 = dma.hbm_to_vmem [thread:$0]  %s4, 2048, %s238, [#allocation14], 128, 128, 8
        $region24: #{tpu_custom_call.1} parent=11 // pred_fallthru
          _
        // Predicated region
        $region25: #{tpu_custom_call.1} parent=11 // pred_check
          %p244 = pneg %p158
        $region26: #{tpu_custom_call.1} parent=11 // pred_check_branch
          %246 = sbr.rel (%p244) target = $region28
        $region27: #{tpu_custom_call.1} parent=11 // pred_region
          _
        $region28: #{tpu_custom_call.1} parent=11 // pred_fallthru
          _
        // Predicated region
        $region29: #{tpu_custom_call.1} parent=11 // pred_check
          %p247 = pneg %p179
        $region30: #{tpu_custom_call.1} parent=11 // pred_check_branch
          %249 = sbr.rel (%p247) target = $region32
        $region31: #{tpu_custom_call.1} parent=11 // pred_region
          %s251 = ssub.s32 2048, 2048
          %252 = vsyncadd [#allocation14], %s251
          %s253 = sshll.u32 [#allocation15], 4
          %s254 = int_to_ptr.vmem [resolvable:$true] %s253
          %259 = dma.hbm_to_vmem [thread:$0]  %s6, 2048, %s254, [#allocation14], 128, 128, 8
        $region32: #{tpu_custom_call.1} parent=11 // pred_fallthru
          _
      $region12: #{tpu_custom_call.1} parent=5 // pred_fallthru
        _
      %p260 = scmp.lt.s32.totalorder %s22, 2
      // Predicated region
      $region33: #{tpu_custom_call.1} parent=5 // pred_check
        %p261 = pneg %p260
      $region34: #{tpu_custom_call.1} parent=5 // pred_check_branch
        %263 = sbr.rel (%p261) target = $region36
      $region35: #{tpu_custom_call.1} parent=5 // pred_region
        // Predicated region
        $region37: #{tpu_custom_call.1} parent=35 // pred_check
          %p264 = pneg %p63
        $region38: #{tpu_custom_call.1} parent=35 // pred_check_branch
          %266 = sbr.rel (%p264) target = $region40
        $region39: #{tpu_custom_call.1} parent=35 // pred_region
          %s267 = sand.u32 %s53, 1
          %s268 = scalar_lea.sflag [#allocation8], %s267
          %s269 = sand.u32 %s53, 1
          %s270 = smul.addr %s269, 64
          %s271 = scalar_lea.vmem [#allocation7], %s270
          %s272 = smul.u32 8, %s22
          %s274 = ssub.s32 1024, 1024
          %275 = vsyncadd %s268, %s274
          %s276 = smul.addr %s272, 128
          %s277 = scalar_lea.hbm %s1, %s276
          %s278 = sshll.u32 %s271, 4
          %s279 = int_to_ptr.vmem [resolvable:$true] %s278
          %284 = dma.hbm_to_vmem [thread:$0]  %s277, 1024, %s279, %s268, 128, 128, 8
        $region40: #{tpu_custom_call.1} parent=35 // pred_fallthru
          _
        // Predicated region
        $region41: #{tpu_custom_call.1} parent=35 // pred_check
          %p285 = pneg %p89
        $region42: #{tpu_custom_call.1} parent=35 // pred_check_branch
          %287 = sbr.rel (%p285) target = $region44
        $region43: #{tpu_custom_call.1} parent=35 // pred_region
          %s288 = sand.u32 %s22, 1
          %s289 = scalar_lea.sflag [#allocation11], %s288
          %s290 = sand.u32 %s79, 1
          %s291 = smul.addr %s290, 8
          %s292 = scalar_lea.vmem [#allocation10], %s291
          %s294 = ssub.s32 128, 128
          %295 = vsyncadd %s289, %s294
          %s296 = smul.addr %s22, 128
          %s297 = scalar_lea.hbm %s2, %s296
          %s299 = sshll.u32 %s292, 4
          %s300 = int_to_ptr.vmem [resolvable:$true] %s299
          %302 = dma.hbm_to_vmem [thread:$0]  %s297, 128, %s300, %s289
        $region44: #{tpu_custom_call.1} parent=35 // pred_fallthru
          _
      $region36: #{tpu_custom_call.1} parent=5 // pred_fallthru
        _
      %p303 = scmp.le.s32.totalorder 1, %s22
      %p304 = scmp.lt.s32.totalorder %s22, 3
      %p305 = pnand %p303, %p304
      %p306 = pneg %p305
      // Predicated region
      $region45: #{tpu_custom_call.1} parent=5 // pred_check
        _
      $region46: #{tpu_custom_call.1} parent=5 // pred_check_branch
        %308 = sbr.rel (%p305) target = $region48
      $region47: #{tpu_custom_call.1} parent=5 // pred_region
        %s309 = ssub.s32 %s22, 1
        %s310 = sand.u32 %s56, 1
        %s311 = scalar_lea.sflag [#allocation8], %s310
        %s312 = sand.u32 %s56, 1
        %s313 = smul.addr %s312, 64
        %s314 = scalar_lea.vmem [#allocation7], %s313
        // Predicated region
        $region49: #{tpu_custom_call.1} parent=47 // pred_check
          %p315 = pneg %p69
        $region50: #{tpu_custom_call.1} parent=47 // pred_check_branch
          %317 = sbr.rel (%p315) target = $region52
        $region51: #{tpu_custom_call.1} parent=47 // pred_region
          %318 = dma.done %s311, 1024
        $region52: #{tpu_custom_call.1} parent=47 // pred_fallthru
          _
        %s319 = sand.u32 %s27, 1
        %s320 = scalar_lea.sflag [#allocation11], %s319
        %s321 = sand.u32 %s82, 1
        %s322 = smul.addr %s321, 8
        %s323 = scalar_lea.vmem [#allocation10], %s322
        // Predicated region
        $region53: #{tpu_custom_call.1} parent=47 // pred_check
          %p324 = pneg %p95
        $region54: #{tpu_custom_call.1} parent=47 // pred_check_branch
          %326 = sbr.rel (%p324) target = $region56
        $region55: #{tpu_custom_call.1} parent=47 // pred_region
          %327 = dma.done %s320, 128
        $region56: #{tpu_custom_call.1} parent=47 // pred_fallthru
          _
        // Predicated region
        $region57: #{tpu_custom_call.1} parent=47 // pred_check
          %p328 = pneg %p116
        $region58: #{tpu_custom_call.1} parent=47 // pred_check_branch
          %330 = sbr.rel (%p328) target = $region60
        $region59: #{tpu_custom_call.1} parent=47 // pred_region
          %331 = dma.done [#allocation11], 256
        $region60: #{tpu_custom_call.1} parent=47 // pred_fallthru
          _
        // Predicated region
        $region61: #{tpu_custom_call.1} parent=47 // pred_check
          %p332 = pneg %p137
        $region62: #{tpu_custom_call.1} parent=47 // pred_check_branch
          %334 = sbr.rel (%p332) target = $region64
        $region63: #{tpu_custom_call.1} parent=47 // pred_region
          %335 = dma.done [#allocation14], 2048
        $region64: #{tpu_custom_call.1} parent=47 // pred_fallthru
          _
        // Predicated region
        $region65: #{tpu_custom_call.1} parent=47 // pred_check
          %p336 = pneg %p179
        $region66: #{tpu_custom_call.1} parent=47 // pred_check_branch
          %338 = sbr.rel (%p336) target = $region68
        $region67: #{tpu_custom_call.1} parent=47 // pred_region
          %339 = dma.done [#allocation14], 2048
        $region68: #{tpu_custom_call.1} parent=47 // pred_fallthru
          _
        %p340 = pneg %p43
        %p341 = pneg %p40
        %s342 = sand.u32 %s56, 1
        %s343 = scalar_lea.sflag [#allocation8], %s342
        %s344 = sand.u32 %s56, 1
        %s345 = smul.addr %s344, 64
        %s346 = scalar_lea.vmem [#allocation7], %s345
        %p347 = pneg %p69
        %p348 = pneg %p66
        %s349 = sand.u32 %s27, 1
        %s350 = scalar_lea.sflag [#allocation11], %s349
        %s351 = sand.u32 %s82, 1
        %s352 = smul.addr %s351, 8
        %s353 = scalar_lea.vmem [#allocation10], %s352
        %p354 = pneg %p95
        %p355 = pneg %p92
        %p356 = pneg %p116
        %p357 = pneg %p113
        %p358 = pneg %p137
        %p359 = pneg %p134
        %p360 = pneg %p158
        %p361 = pneg %p155
        %p362 = pneg %p179
        %p363 = pneg %p176
        %p364 = pneg %p200
        %p365 = pneg %p197
        %s366 = smul.u32 8, %s27
        %s367 = sld [smem:[#allocation6]]
        %p368 = scmp.eq.s32.totalorder %s27, 0
        // Predicated region
        $region69: #{tpu_custom_call.1} parent=47 // pred_check
          %p369 = pneg %p368
        $region70: #{tpu_custom_call.1} parent=47 // pred_check_branch
          %371 = sbr.rel (%p369) target = $region72
        $region71: #{tpu_custom_call.1} parent=47 // pred_region
          %vm372 = vcmask 122880
          %373 = vst.msk [vmem:[#allocation2] sm:$0x1] %vm372, -inf
          %374 = vst.msk [vmem:[#allocation3] sm:$0x1] %vm372, 0.0
          %vm375 = vcmask 0
          %376 = vst.msk [vmem:[#allocation4] sm:$0x1] %vm375, 0.0
          %377 = vst.msk [vmem:[#allocation5] sm:$0x1] %vm375, 0.0
        $region72: #{tpu_custom_call.1} parent=47 // pred_fallthru
          _
        %v378 = vld [vmem:[%s314] sm:$0xff]
        %v379 = vld [vmem:[%s314 + $0x8] sm:$0xff]
        %v380 = vld [vmem:[%s314 + $0x10] sm:$0xff]
        %v381 = vld [vmem:[%s314 + $0x18] sm:$0xff]
        %v382 = vld [vmem:[%s314 + $0x20] sm:$0xff]
        %v383 = vld [vmem:[%s314 + $0x28] sm:$0xff]
        %v384 = vld [vmem:[%s314 + $0x30] sm:$0xff]
        %v385 = vld [vmem:[%s314 + $0x38] sm:$0xff]
        %v386 = vld [vmem:[#allocation13] sm:$0xff]
        %v387 = vld [vmem:[#allocation13 + $0x8] sm:$0xff]
        %v388 = vld [vmem:[#allocation13 + $0x10] sm:$0xff]
        %v389 = vld [vmem:[#allocation13 + $0x18] sm:$0xff]
        %v390 = vld [vmem:[#allocation13 + $0x20] sm:$0xff]
        %v391 = vld [vmem:[#allocation13 + $0x28] sm:$0xff]
        %v392 = vld [vmem:[#allocation13 + $0x30] sm:$0xff]
        %v393 = vld [vmem:[#allocation13 + $0x38] sm:$0xff]
        %v394 = vld [vmem:[#allocation13 + $0x40] sm:$0xff]
        %v395 = vld [vmem:[#allocation13 + $0x48] sm:$0xff]
        %v396 = vld [vmem:[#allocation13 + $0x50] sm:$0xff]
        %v397 = vld [vmem:[#allocation13 + $0x58] sm:$0xff]
        %v398 = vld [vmem:[#allocation13 + $0x60] sm:$0xff]
        %v399 = vld [vmem:[#allocation13 + $0x68] sm:$0xff]
        %v400 = vld [vmem:[#allocation13 + $0x70] sm:$0xff]
        %v401 = vld [vmem:[#allocation13 + $0x78] sm:$0xff]
        %v402 = vld [vmem:[%s5] sm:$0x1]
        %v403 = vld [vmem:[#allocation15] sm:$0xff]
        %v404 = vld [vmem:[#allocation15 + $0x8] sm:$0xff]
        %v405 = vld [vmem:[#allocation15 + $0x10] sm:$0xff]
        %v406 = vld [vmem:[#allocation15 + $0x18] sm:$0xff]
        %v407 = vld [vmem:[#allocation15 + $0x20] sm:$0xff]
        %v408 = vld [vmem:[#allocation15 + $0x28] sm:$0xff]
        %v409 = vld [vmem:[#allocation15 + $0x30] sm:$0xff]
        %v410 = vld [vmem:[#allocation15 + $0x38] sm:$0xff]
        %v411 = vld [vmem:[#allocation15 + $0x40] sm:$0xff]
        %v412 = vld [vmem:[#allocation15 + $0x48] sm:$0xff]
        %v413 = vld [vmem:[#allocation15 + $0x50] sm:$0xff]
        %v414 = vld [vmem:[#allocation15 + $0x58] sm:$0xff]
        %v415 = vld [vmem:[#allocation15 + $0x60] sm:$0xff]
        %v416 = vld [vmem:[#allocation15 + $0x68] sm:$0xff]
        %v417 = vld [vmem:[#allocation15 + $0x70] sm:$0xff]
        %v418 = vld [vmem:[#allocation15 + $0x78] sm:$0xff]
        %v419 = vrot.slane %v378, 4
        %v420 = vadd.f32 %v378, %v419
        %v421 = vrot.slane %v420, 2
        %v422 = vadd.f32 %v420, %v421
        %v423 = vrot.slane %v422, 1
        %v424 = vadd.f32 %v422, %v423
        %v425 = vrot.slane %v379, 4
        %v426 = vadd.f32 %v379, %v425
        %v427 = vrot.slane %v426, 2
        %v428 = vadd.f32 %v426, %v427
        %v429 = vrot.slane %v428, 1
        %v430 = vadd.f32 %v428, %v429
        %v431 = vrot.slane %v380, 4
        %v432 = vadd.f32 %v380, %v431
        %v433 = vrot.slane %v432, 2
        %v434 = vadd.f32 %v432, %v433
        %v435 = vrot.slane %v434, 1
        %v436 = vadd.f32 %v434, %v435
        %v437 = vrot.slane %v381, 4
        %v438 = vadd.f32 %v381, %v437
        %v439 = vrot.slane %v438, 2
        %v440 = vadd.f32 %v438, %v439
        %v441 = vrot.slane %v440, 1
        %v442 = vadd.f32 %v440, %v441
        %v443 = vrot.slane %v382, 4
        %v444 = vadd.f32 %v382, %v443
        %v445 = vrot.slane %v444, 2
        %v446 = vadd.f32 %v444, %v445
        %v447 = vrot.slane %v446, 1
        %v448 = vadd.f32 %v446, %v447
        %v449 = vrot.slane %v383, 4
        %v450 = vadd.f32 %v383, %v449
        %v451 = vrot.slane %v450, 2
        %v452 = vadd.f32 %v450, %v451
        %v453 = vrot.slane %v452, 1
        %v454 = vadd.f32 %v452, %v453
        %v455 = vrot.slane %v384, 4
        %v456 = vadd.f32 %v384, %v455
        %v457 = vrot.slane %v456, 2
        %v458 = vadd.f32 %v456, %v457
        %v459 = vrot.slane %v458, 1
        %v460 = vadd.f32 %v458, %v459
        %v461 = vrot.slane %v385, 4
        %v462 = vadd.f32 %v385, %v461
        %v463 = vrot.slane %v462, 2
        %v464 = vadd.f32 %v462, %v463
        %v465 = vrot.slane %v464, 1
        %v466 = vadd.f32 %v464, %v465
        %v467 = vrcp.pop 8.0
        %v468 = vmul.f32 %v424, %v467
        %v469 = vmul.f32 %v430, %v467
        %v470 = vmul.f32 %v436, %v467
        %v471 = vmul.f32 %v442, %v467
        %v472 = vmul.f32 %v448, %v467
        %v473 = vmul.f32 %v454, %v467
        %v474 = vmul.f32 %v460, %v467
        %v475 = vmul.f32 %v466, %v467
        %v477 = vlaneseq
        %v478 = vshrl.u32 %v477, 7
        %v479 = vsub.s32 0, %v478
        %v480 = vrot.slane %v402, %v479
        %vm490 = vcmask 1041409
        %v491 = vsel %vm490, %v469, %v468
        %vm492 = vcmask 1042434
        %v493 = vsel %vm492, %v470, %v491
        %vm494 = vcmask 1043459
        %v495 = vsel %vm494, %v471, %v493
        %vm496 = vcmask 1044484
        %v497 = vsel %vm496, %v472, %v495
        %vm498 = vcmask 1045509
        %v499 = vsel %vm498, %v473, %v497
        %vm500 = vcmask 1046534
        %v501 = vsel %vm500, %v474, %v499
        %vm502 = vcmask 1047559
        %v503 = vsel %vm502, %v475, %v501
        %505 = vmatprep.subr.mxu0 0.0
        %506 = vmatpush1.msra.mxu0 %v401
        %507 = vmatprep.subr.mxu0 0.0
        %508 = vmatpush1.msra.mxu0 %v400
        %509 = vmatprep.subr.mxu0 0.0
        %510 = vmatpush1.msra.mxu0 %v399
        %511 = vmatprep.subr.mxu0 0.0
        %512 = vmatpush1.msra.mxu0 %v398
        %513 = vmatprep.subr.mxu0 0.0
        %514 = vmatpush1.msra.mxu0 %v397
        %515 = vmatprep.subr.mxu0 0.0
        %516 = vmatpush1.msra.mxu0 %v396
        %517 = vmatprep.subr.mxu0 0.0
        %518 = vmatpush1.msra.mxu0 %v395
        %519 = vmatprep.subr.mxu0 0.0
        %520 = vmatpush1.msra.mxu0 %v394
        %521 = vmatprep.subr.mxu0 0.0
        %522 = vmatpush1.msra.mxu0 %v393
        %523 = vmatprep.subr.mxu0 0.0
        %524 = vmatpush1.msra.mxu0 %v392
        %525 = vmatprep.subr.mxu0 0.0
        %526 = vmatpush1.msra.mxu0 %v391
        %527 = vmatprep.subr.mxu0 0.0
        %528 = vmatpush1.msra.mxu0 %v390
        %529 = vmatprep.subr.mxu0 0.0
        %530 = vmatpush1.msra.mxu0 %v389
        %531 = vmatprep.subr.mxu0 0.0
        %532 = vmatpush1.msra.mxu0 %v388
        %533 = vmatprep.subr.mxu0 0.0
        %534 = vmatpush1.msra.mxu0 %v387
        %535 = vmatprep.subr.mxu0 0.0
        %536 = vmatpush1.msra.mxu0 %v386
        %537 = vmatprep.subr.mxu0 0.0
        %538 = vmatpush2.msra.mxu0 0.0
        %539 = vmatprep.subr.mxu0 0.0
        %540 = vmatpush2.msra.mxu0 0.0
        %541 = vmatprep.subr.mxu0 0.0
        %542 = vmatpush2.msra.mxu0 0.0
        %543 = vmatprep.subr.mxu0 0.0
        %544 = vmatpush2.msra.mxu0 0.0
        %545 = vmatprep.subr.mxu0 0.0
        %546 = vmatpush2.msra.mxu0 0.0
        %547 = vmatprep.subr.mxu0 0.0
        %548 = vmatpush2.msra.mxu0 0.0
        %549 = vmatprep.subr.mxu0 0.0
        %550 = vmatpush2.msra.mxu0 0.0
        %551 = vmatprep.subr.mxu0 0.0
        %552 = vmatpush2.msra.mxu0 0.0
        %553 = vmatprep.subr.mxu0 0.0
        %554 = vmatpush2.msra.mxu0 0.0
        %555 = vmatprep.subr.mxu0 0.0
        %556 = vmatpush2.msra.mxu0 0.0
        %557 = vmatprep.subr.mxu0 0.0
        %558 = vmatpush2.msra.mxu0 0.0
        %559 = vmatprep.subr.mxu0 0.0
        %560 = vmatpush2.msra.mxu0 0.0
        %561 = vmatprep.subr.mxu0 0.0
        %562 = vmatpush2.msra.mxu0 0.0
        %563 = vmatprep.subr.mxu0 0.0
        %564 = vmatpush2.msra.mxu0 0.0
        %565 = vmatprep.subr.mxu0 0.0
        %566 = vmatpush2.msra.mxu0 0.0
        %567 = vmatprep.subr.mxu0 0.0
        %568 = vmatpush2.msra.mxu0 0.0
        %569 = vmatprep.mubr.f32.mxu0 0.0
        %570 = vmatmul.mubr.f32.gmra.mxu0 %v503
        %v571 = vpop.f32.mrf.mxu0
        %v572 = vadd.f32 %v480, %v571
        %v573 = vpop.f32.mrf.mxu0
        %574 = vdwg.mxu0
        %v575 = vtanh.pop %v572
        %576 = vmatprep.subr.mxu0 0.0
        %577 = vmatpush1.msra.mxu0 %v418
        %578 = vmatprep.subr.mxu0 0.0
        %579 = vmatpush1.msra.mxu0 %v417
        %580 = vmatprep.subr.mxu0 0.0
        %581 = vmatpush1.msra.mxu0 %v416
        %582 = vmatprep.subr.mxu0 0.0
        %583 = vmatpush1.msra.mxu0 %v415
        %584 = vmatprep.subr.mxu0 0.0
        %585 = vmatpush1.msra.mxu0 %v414
        %586 = vmatprep.subr.mxu0 0.0
        %587 = vmatpush1.msra.mxu0 %v413
        %588 = vmatprep.subr.mxu0 0.0
        %589 = vmatpush1.msra.mxu0 %v412
        %590 = vmatprep.subr.mxu0 0.0
        %591 = vmatpush1.msra.mxu0 %v411
        %592 = vmatprep.subr.mxu0 0.0
        %593 = vmatpush1.msra.mxu0 %v410
        %594 = vmatprep.subr.mxu0 0.0
        %595 = vmatpush1.msra.mxu0 %v409
        %596 = vmatprep.subr.mxu0 0.0
        %597 = vmatpush1.msra.mxu0 %v408
        %598 = vmatprep.subr.mxu0 0.0
        %599 = vmatpush1.msra.mxu0 %v407
        %600 = vmatprep.subr.mxu0 0.0
        %601 = vmatpush1.msra.mxu0 %v406
        %602 = vmatprep.subr.mxu0 0.0
        %603 = vmatpush1.msra.mxu0 %v405
        %604 = vmatprep.subr.mxu0 0.0
        %605 = vmatpush1.msra.mxu0 %v404
        %606 = vmatprep.subr.mxu0 0.0
        %607 = vmatpush1.msra.mxu0 %v403
        %608 = vmatprep.subr.mxu0 0.0
        %609 = vmatpush2.msra.mxu0 0.0
        %610 = vmatprep.subr.mxu0 0.0
        %611 = vmatpush2.msra.mxu0 0.0
        %612 = vmatprep.subr.mxu0 0.0
        %613 = vmatpush2.msra.mxu0 0.0
        %614 = vmatprep.subr.mxu0 0.0
        %615 = vmatpush2.msra.mxu0 0.0
        %616 = vmatprep.subr.mxu0 0.0
        %617 = vmatpush2.msra.mxu0 0.0
        %618 = vmatprep.subr.mxu0 0.0
        %619 = vmatpush2.msra.mxu0 0.0
        %620 = vmatprep.subr.mxu0 0.0
        %621 = vmatpush2.msra.mxu0 0.0
        %622 = vmatprep.subr.mxu0 0.0
        %623 = vmatpush2.msra.mxu0 0.0
        %624 = vmatprep.subr.mxu0 0.0
        %625 = vmatpush2.msra.mxu0 0.0
        %626 = vmatprep.subr.mxu0 0.0
        %627 = vmatpush2.msra.mxu0 0.0
        %628 = vmatprep.subr.mxu0 0.0
        %629 = vmatpush2.msra.mxu0 0.0
        %630 = vmatprep.subr.mxu0 0.0
        %631 = vmatpush2.msra.mxu0 0.0
        %632 = vmatprep.subr.mxu0 0.0
        %633 = vmatpush2.msra.mxu0 0.0
        %634 = vmatprep.subr.mxu0 0.0
        %635 = vmatpush2.msra.mxu0 0.0
        %636 = vmatprep.subr.mxu0 0.0
        %637 = vmatpush2.msra.mxu0 0.0
        %638 = vmatprep.subr.mxu0 0.0
        %639 = vmatpush2.msra.mxu0 0.0
        %640 = vmatprep.mubr.f32.mxu0 0.0
        %641 = vmatmul.mubr.f32.gmra.mxu0 %v575
        %v642 = vpop.f32.mrf.mxu0
        %v643 = vadd.f32 0.0, %v642
        %v644 = vpop.f32.mrf.mxu0
        %645 = vdwg.mxu0
        %v646 = vmul.f32 %v643, %v643
        %647 = vadd.xlane.f32.xlu0 %v646
        %v648 = vpop.xlane.xlu0 %647
        %v649 = vmax.f32 %v648, 1e-12
        %v650 = vrsqrt.pop %v649
        %v651 = vmul.f32 %v643, %v650
        %v652 = vld [vmem:[%s323] sm:$0xff]
        %v653 = vmul.f32 %v652, %v652
        %654 = vadd.xlane.f32.xlu0 %v653
        %v655 = vpop.xlane.xlu0 %654
        %v656 = vmax.f32 %v655, 1e-12
        %v657 = vrsqrt.pop %v656
        %v658 = vmul.f32 %v652, %v657
        %v659 = vld [vmem:[#allocation12] sm:$0xff]
        %v660 = vld [vmem:[#allocation12 + $0x8] sm:$0xff]
        %v661 = vmul.f32 %v659, %v659
        %v662 = vmul.f32 %v660, %v660
        %663 = vadd.xlane.f32.xlu0 %v661
        %v664 = vpop.xlane.xlu0 %663
        %665 = vadd.xlane.f32.xlu0 %v662
        %v666 = vpop.xlane.xlu0 %665
        %v667 = vmax.f32 %v664, 1e-12
        %v668 = vmax.f32 %v666, 1e-12
        %v669 = vrsqrt.pop %v667
        %v670 = vrsqrt.pop %v668
        %v671 = vmul.f32 %v659, %v669
        %v672 = vmul.f32 %v660, %v670
        %v673 = vld [vmem:[#allocation5] sm:$0x1]
        %v674 = vmul.f32 %v651, %v658
        %675 = vadd.xlane.f32.xlu0 %v674
        %v676 = vpop.xlane.xlu0 %675
        %v677 = vrot.slane %v676, 4
        %v678 = vadd.f32 %v676, %v677
        %v679 = vrot.slane %v678, 2
        %v680 = vadd.f32 %v678, %v679
        %v681 = vrot.slane %v680, 1
        %v682 = vadd.f32 %v680, %v681
        %v683 = vstv %s367
        %v684 = vmul.f32 %v683, %v682
        %v685 = vadd.f32 %v673, %v684
        %vm686 = vcmask 0
        %687 = vst.msk [vmem:[#allocation5] sm:$0x1] %vm686, %v685
        %688 = vmatprep.subr.mxu0 0.0
        %689 = vmatpush1.xpose.msra.mxu0 0.0
        %690 = vmatprep.subr.mxu0 0.0
        %691 = vmatpush1.xpose.msra.mxu0 0.0
        %692 = vmatprep.subr.mxu0 0.0
        %693 = vmatpush1.xpose.msra.mxu0 0.0
        %694 = vmatprep.subr.mxu0 0.0
        %695 = vmatpush1.xpose.msra.mxu0 0.0
        %696 = vmatprep.subr.mxu0 0.0
        %697 = vmatpush1.xpose.msra.mxu0 0.0
        %698 = vmatprep.subr.mxu0 0.0
        %699 = vmatpush1.xpose.msra.mxu0 0.0
        %700 = vmatprep.subr.mxu0 0.0
        %701 = vmatpush1.xpose.msra.mxu0 0.0
        %702 = vmatprep.subr.mxu0 0.0
        %703 = vmatpush1.xpose.msra.mxu0 0.0
        %704 = vmatprep.subr.mxu0 0.0
        %705 = vmatpush1.xpose.msra.mxu0 0.0
        %706 = vmatprep.subr.mxu0 0.0
        %707 = vmatpush1.xpose.msra.mxu0 0.0
        %708 = vmatprep.subr.mxu0 0.0
        %709 = vmatpush1.xpose.msra.mxu0 0.0
        %710 = vmatprep.subr.mxu0 0.0
        %711 = vmatpush1.xpose.msra.mxu0 0.0
        %712 = vmatprep.subr.mxu0 0.0
        %713 = vmatpush1.xpose.msra.mxu0 0.0
        %714 = vmatprep.subr.mxu0 0.0
        %715 = vmatpush1.xpose.msra.mxu0 0.0
        %716 = vmatprep.subr.mxu0 0.0
        %717 = vmatpush1.xpose.msra.mxu0 %v672
        %718 = vmatprep.subr.mxu0 0.0
        %719 = vmatpush1.xpose.msra.mxu0 %v671
        %720 = vmatprep.subr.mxu0 0.0
        %721 = vmatpush2.xpose.msra.mxu0 0.0
        %722 = vmatprep.subr.mxu0 0.0
        %723 = vmatpush2.xpose.msra.mxu0 0.0
        %724 = vmatprep.subr.mxu0 0.0
        %725 = vmatpush2.xpose.msra.mxu0 0.0
        %726 = vmatprep.subr.mxu0 0.0
        %727 = vmatpush2.xpose.msra.mxu0 0.0
        %728 = vmatprep.subr.mxu0 0.0
        %729 = vmatpush2.xpose.msra.mxu0 0.0
        %730 = vmatprep.subr.mxu0 0.0
        %731 = vmatpush2.xpose.msra.mxu0 0.0
        %732 = vmatprep.subr.mxu0 0.0
        %733 = vmatpush2.xpose.msra.mxu0 0.0
        %734 = vmatprep.subr.mxu0 0.0
        %735 = vmatpush2.xpose.msra.mxu0 0.0
        %736 = vmatprep.subr.mxu0 0.0
        %737 = vmatpush2.xpose.msra.mxu0 0.0
        %738 = vmatprep.subr.mxu0 0.0
        %739 = vmatpush2.xpose.msra.mxu0 0.0
        %740 = vmatprep.subr.mxu0 0.0
        %741 = vmatpush2.xpose.msra.mxu0 0.0
        %742 = vmatprep.subr.mxu0 0.0
        %743 = vmatpush2.xpose.msra.mxu0 0.0
        %744 = vmatprep.subr.mxu0 0.0
        %745 = vmatpush2.xpose.msra.mxu0 0.0
        %746 = vmatprep.subr.mxu0 0.0
        %747 = vmatpush2.xpose.msra.mxu0 0.0
        %748 = vmatprep.subr.mxu0 0.0
        %749 = vmatpush2.xpose.msra.mxu0 0.0
        %750 = vmatprep.subr.mxu0 0.0
        %751 = vmatpush2.xpose.msra.mxu0 0.0
        %752 = vmatprep.mubr.f32.mxu0 0.0
        %753 = vmatmul.mubr.f32.gmra.mxu0 %v651
        %v754 = vpop.f32.mrf.mxu0
        %v755 = vadd.f32 0.0, %v754
        %v756 = vpop.f32.mrf.mxu0
        %757 = vdwg.mxu0
        %v758 = vmul.f32 %v755, %v683
        %vm759 = vcmask 130048
        %v760 = vsel %vm759, %v758, -inf
        %761 = vmax.xlane.f32.xlu0 %v760
        %v762 = vpop.xlane.xlu0 %761
        %v763 = vsub.f32 %v758, %v762
        %v764 = vmul.f32 %v763, 1.442695
        %v765 = vpow.pop %v764
        %v766 = vsel %vm759, %v765, 0.0
        %767 = vadd.xlane.f32.xlu0 %v766
        %v768 = vpop.xlane.xlu0 %767
        %v769 = vlog2.pop %v768
        %v770 = vmul.f32 %v769, 0.6931472
        %v771 = vadd.f32 %v762, %v770
        %v772 = vld [vmem:[#allocation4] sm:$0x1]
        %v773 = vrot.slane %v771, 4
        %v774 = vadd.f32 %v771, %v773
        %v775 = vrot.slane %v774, 2
        %v776 = vadd.f32 %v774, %v775
        %v777 = vrot.slane %v776, 1
        %v778 = vadd.f32 %v776, %v777
        %v779 = vadd.f32 %v772, %v778
        %780 = vst.msk [vmem:[#allocation4] sm:$0x1] %vm686, %v779
        %v781 = vld [vmem:[#allocation2] sm:$0x1]
        %v782 = vrot.slane %v760, 4
        %v783 = vmax.f32 %v760, %v782
        %v784 = vrot.slane %v783, 2
        %v785 = vmax.f32 %v783, %v784
        %v786 = vrot.slane %v785, 1
        %v787 = vmax.f32 %v785, %v786
        %v788 = vmax.f32 %v781, %v787
        %v789 = vld [vmem:[#allocation3] sm:$0x1]
        %v790 = vsub.f32 %v781, %v788
        %v791 = vmul.f32 %v790, 1.442695
        %v792 = vpow.pop %v791
        %v793 = vmul.f32 %v789, %v792
        %v795 = vlaneseq
        %v796 = vshrl.u32 %v795, 7
        %v797 = vsub.s32 0, %v796
        %v798 = vrot.slane %v788, %v797
        %v800 = vsub.f32 %v758, %v798
        %v801 = vmul.f32 %v800, 1.442695
        %v802 = vpow.pop %v801
        %v803 = vsel %vm759, %v802, 0.0
        %v804 = vrot.slane %v803, 4
        %v805 = vadd.f32 %v803, %v804
        %v806 = vrot.slane %v805, 2
        %v807 = vadd.f32 %v805, %v806
        %v808 = vrot.slane %v807, 1
        %v809 = vadd.f32 %v807, %v808
        %v810 = vadd.f32 %v793, %v809
        %vm811 = vcmask 122880
        %812 = vst.msk [vmem:[#allocation3] sm:$0x1] %vm811, %v810
        %813 = vst.msk [vmem:[#allocation2] sm:$0x1] %vm811, %v788
        %p814 = scmp.eq.s32.totalorder %s27, 1
        // Predicated region
        $region73: #{tpu_custom_call.1} parent=47 // pred_check
          %p815 = pneg %p814
        $region74: #{tpu_custom_call.1} parent=47 // pred_check_branch
          %817 = sbr.rel (%p815) target = $region76
        $region75: #{tpu_custom_call.1} parent=47 // pred_region
          %v818 = vld [vmem:[#allocation2] sm:$0x1]
          %v819 = vld [vmem:[#allocation3] sm:$0x1]
          %v820 = vlog2.pop %v819
          %v821 = vmul.f32 %v820, 0.6931472
          %v822 = vadd.f32 %v818, %v821
          %v823 = vsel %vm811, %v822, 0.0
          %824 = vadd.xlane.f32.xlu0 %v823
          %v825 = vpop.xlane.xlu0 %824
          %v826 = vld [vmem:[#allocation4] sm:$0x1]
          %v827 = vadd.f32 %v826, %v825
          %v828 = vmul.f32 %v827, 0.5
          %v829 = vld [vmem:[#allocation5] sm:$0x1]
          %v830 = vsub.f32 %v828, %v829
          %v831 = vmul.f32 %v830, 0.0625
          %832 = vst.msk [vmem:[#allocation16] sm:$0x1] %vm686, %v831
        $region76: #{tpu_custom_call.1} parent=47 // pred_fallthru
          _
        // Predicated region
        $region77: #{tpu_custom_call.1} parent=47 // pred_check
          %p833 = pneg %p197
        $region78: #{tpu_custom_call.1} parent=47 // pred_check_branch
          %835 = sbr.rel (%p833) target = $region80
        $region79: #{tpu_custom_call.1} parent=47 // pred_region
          %s837 = ssub.s32 16, 16
          %838 = vsyncadd [#allocation9], %s837
          %s840 = sshll.u32 [#allocation16], 4
          %s841 = int_to_ptr.vmem [resolvable:$true] %s840
          %843 = dma.vmem_to_hbm [thread:$0]  %s841, 16, %s7, [#allocation9]
        $region80: #{tpu_custom_call.1} parent=47 // pred_fallthru
          _
        // Predicated region
        $region81: #{tpu_custom_call.1} parent=47 // pred_check
          %p844 = pneg %p197
        $region82: #{tpu_custom_call.1} parent=47 // pred_check_branch
          %846 = sbr.rel (%p844) target = $region84
        $region83: #{tpu_custom_call.1} parent=47 // pred_region
          %847 = dma.done [#allocation9], 16
        $region84: #{tpu_custom_call.1} parent=47 // pred_fallthru
          _
      $region48: #{tpu_custom_call.1} parent=5 // pred_fallthru
        _
      %p848 = scmp.le.s32.totalorder 2, %s22
      // Predicated region
      $region85: #{tpu_custom_call.1} parent=5 // pred_check
        %p849 = pneg %p848
      $region86: #{tpu_custom_call.1} parent=5 // pred_check_branch
        %851 = sbr.rel (%p849) target = $region88
      $region87: #{tpu_custom_call.1} parent=5 // pred_region
        %s852 = ssub.s32 %s22, 2
      $region88: #{tpu_custom_call.1} parent=5 // pred_fallthru
        _
    $region6: #{tpu_custom_call.1} parent=1 // loop_footer
      %s26 = sadd.s32 1, %s22
    $region7: #{tpu_custom_call.1} parent=1 // loop_footer_branch
      %21 = sbr.rel target = $region3
    $region8: #{tpu_custom_call.1} parent=1 // loop_exit
      _
    %853 = vsyncpa [#allocation8], 1
    %s854 = scalar_lea.sflag [#allocation8], 1
    %855 = vsyncpa %s854, 1
    %856 = vsyncpa [#allocation11], 1
    %s857 = scalar_lea.sflag [#allocation11], 1
    %858 = vsyncpa %s857, 1
    %859 = vsyncpa [#allocation14], 1
    %860 = vsyncpa [#allocation9], 1
    %s861 = scalar_lea.sflag [#allocation9], 1
    %862 = vsyncpa %s861, 1

</llo_original>
